<compile_context>
chip_gen: v7x
topology: tpu7x:2x2x1
jax: 0.10.0
libtpu: 0.0.40
codegen_flags: <defaults>
</compile_context>

<pallas_src>
import functools
import re

import jax
import jax.numpy as jnp
from jax.experimental import pallas as pl
from jax.experimental.pallas import tpu as pltpu


def _cdiv(a, b):
    return -(-a // b)


def _round_up(a, m):
    return _cdiv(a, m) * m


def _tpu_generation():
    """Best-effort TPU generation (5, 6, 7, ...) from device_kind; None if unknown."""
    try:
        kind = jax.devices()[0].device_kind.lower()
    except Exception:
        return None
    if "tpu" not in kind:
        return None
    m = re.search(r"(\d+)", kind)
    return int(m.group(1)) if m else None


def _default_block_bytes(gen):
    # Budget is per input block; double-buffering makes VMEM use ~2x this.
    if gen is None:
        return 2 * 1024 * 1024
    if gen >= 6:
        return 8 * 1024 * 1024   # v6e/v7x: 32 MiB default scoped VMEM -> 16 MiB dbl-buf ok
    if gen == 5:
        return 4 * 1024 * 1024   # v5e: 16 MiB default scoped VMEM -> 8 MiB dbl-buf ok
    return 2 * 1024 * 1024


def _select_tiles(R, L, itemsize, sublane, budget_elems, gen):
    """Pick (row_tile, l_tile) under the block budget.

    Row tile: multiple of the dtype's sublane packing, capped at 1024; split in half only
    on v7x (2 TensorCores) -- on single-TC chips splitting R just adds grid steps.
    Reduction tile: whole axis if it fits; otherwise shrink the row tile first so each
    DMA row stays >= ~2 KiB contiguous, before dropping toward the 128-lane minimum.
    """
    L_lanes = _round_up(L, 128)

    if gen is not None and gen >= 7 and R > 2 * sublane:
        tr = min(1024, _round_up(_cdiv(R, 2), sublane))
    else:
        tr = min(1024, _round_up(R, sublane))

    def l_for(t):
        if L_lanes * t <= budget_elems:
            return L                                  # full reduction axis in one block
        return max(128, ((budget_elems // t) // 128) * 128)

    min_l = max(128, _round_up(_cdiv(2048, itemsize), 128))   # >= 2 KiB contiguous rows
    while tr > sublane:
        lt = l_for(tr)
        if lt >= L or lt >= min_l:
            break
        tr = max(sublane, _round_up(_cdiv(tr, 2), sublane))
    return tr, l_for(tr)


def _pool_sum_kernel(*refs, l_total, inv_count, out_rows):
    """Accumulate lane-dense window sums of the (TR, Lt) tile into a (ks_pad, TR) scratch.

    refs = (sel_ref?, x_ref, o_ref, acc_ref). When sel_ref is absent (k_s == 1) the
    matmul LHS is an all-ones matrix (plain row sum).
    """
    if len(refs) == 4:
        sel_ref, x_ref, o_ref, acc_ref = refs
    else:
        sel_ref = None
        x_ref, o_ref, acc_ref = refs

    l_idx = pl.program_id(1)
    n_l = pl.num_programs(1)

    @pl.when(l_idx == 0)
    def _():
        acc_ref[...] = jnp.zeros_like(acc_ref)

    tr, l_tile = x_ref.shape
    ks_pad = acc_ref.shape[0]

    def accum(x):
        if not jnp.issubdtype(x.dtype, jnp.floating):
            # MXU needs a float dtype (v7x has no integer MXU path).
            x = x.astype(jnp.float32)
        if sel_ref is None:
            lhs = jnp.ones((ks_pad, l_tile), dtype=x.dtype)
        else:
            lhs = sel_ref[...]
            if lhs.dtype != x.dtype:
                lhs = lhs.astype(x.dtype)
        # lhs @ x^T : (ks_pad, TR) lane-dense partial, f32 accumulate on the MXU.
        # Keep Precision.HIGHEST so f32 inputs are not truncated to bf16 (free: mem-bound).
        part = jax.lax.dot_general(
            lhs, x,
            dimension_numbers=(((1,), (1,)), ((), ())),
            preferred_element_type=jnp.float32,
            precision=jax.lax.Precision.HIGHEST)
        acc_ref[...] += part

    if l_total % l_tile != 0:
        # Tail masking only on the last reduction step; all full blocks are unmasked.
        @pl.when(l_idx < n_l - 1)
        def _():
            accum(x_ref[...])

        @pl.when(l_idx == n_l - 1)
        def _():
            x = x_ref[...]
            # Select zeros (not a 0/1 multiply): the OOB part of the tail DMA buffer is
            # unspecified and may be non-finite.
            lane = jax.lax.broadcasted_iota(jnp.int32, (tr, l_tile), 1)
            valid = l_total - l_idx * l_tile
            accum(jnp.where(lane < valid, x, jnp.zeros_like(x)))
    else:
        accum(x_ref[...])

    @pl.when(l_idx == n_l - 1)
    def _():
        res = acc_ref[0:out_rows, :] * inv_count          # (out_rows, TR) f32 mean
        o_ref[...] = res.astype(o_ref.dtype).reshape(o_ref.shape)


def global_adaptive_avg_pool2d(x, k_s: int = 1, *, block_target_bytes=None):
    """Pallas equivalent of GlobalAdaptiveAvgPool2d(k_s).forward(x).

    x: (N, C, H, W). Requires H % k_s == 0 and W % k_s == 0 (exact PyTorch semantics
    match in that case; k_s=1 is the module's documented use).
    """
    N, C, H, W = x.shape
    # TODO(synk): non-divisible H/W adaptive pooling (uneven bins) not implemented.
    assert H % k_s == 0 and W % k_s == 0, "k_s must divide H and W"
    hb, wb = H // k_s, W // k_s

    gen = _tpu_generation()
    if block_target_bytes is None:
        block_target_bytes = _default_block_bytes(gen)

    itemsize = jnp.dtype(x.dtype).itemsize
    sublane = {1: 32, 2: 16}.get(itemsize, 8)
    budget_elems = max(sublane * 128, block_target_bytes // itemsize)

    ks_pad = max(8, _round_up(k_s, 8))
    if k_s == 1:
        R, L = N * C, H * W            # one full pooling window per row (free view)
        out_rows = 1
    else:
        R, L = N * C * k_s, hb * W     # one output band per row (free view)
        out_rows = ks_pad
    inv_count = 1.0 / float(hb * wb)

    xr = x.reshape(R, L)               # pure view; no HBM copy in either case

    tr, l_tile = _select_tiles(R, L, itemsize, sublane, budget_elems, gen)
    n_r, n_l = _cdiv(R, tr), _cdiv(L, l_tile)
    # TODO(synk): on v7x, when n_r == 1 but n_l >= 2, split the reduction axis across the
    # two TensorCores (partial sums combined in the wrapper) to use both cores' HBM paths.

    kernel = functools.partial(_pool_sum_kernel, l_total=L,
                               inv_count=inv_count, out_rows=out_rows)

    in_arrays, in_specs = [], []
    if k_s > 1:
        # Static 0/1 window selector: sel[j, p] = 1 iff lane p of a band row belongs to
        # output column j. Zero-padded to n_l*l_tile so its blocks never contain garbage.
        sel_dtype = x.dtype if jnp.issubdtype(x.dtype, jnp.floating) else jnp.float32
        L_pad = n_l * l_tile
        p = jnp.arange(L_pad, dtype=jnp.int32)
        jwin = ((p % W) // wb)[None, :]                            # (1, L_pad)
        rows = jnp.arange(ks_pad, dtype=jnp.int32)[:, None]        # (ks_pad, 1)
        in_range = (p < L)[None, :]
        sel = ((jwin == rows) & in_range).astype(sel_dtype)        # (ks_pad, L_pad)
        in_arrays.append(sel)
        in_specs.append(pl.BlockSpec((ks_pad, l_tile), lambda r, l: (0, l)))
    in_arrays.append(xr)
    in_specs.append(pl.BlockSpec((tr, l_tile), lambda r, l: (r, l)))

    out = pl.pallas_call(
        kernel,
        out_shape=jax.ShapeDtypeStruct((n_r, out_rows, tr), x.dtype),
        grid=(n_r, n_l),
        in_specs=in_specs,
        out_specs=pl.BlockSpec((1, out_rows, tr), lambda r, l: (r, 0, 0)),
        scratch_shapes=[pltpu.VMEM((ks_pad, tr), jnp.float32)],
        compiler_params=pltpu.CompilerParams(
            dimension_semantics=("parallel", "arbitrary")),
    )(*in_arrays)

    if k_s == 1:
        return out.reshape(n_r * tr)[:R].reshape(N, C, 1, 1)
    # (n_r, ks_pad, tr) -> (R, k_s); tiny array, the transpose is negligible.
    out = out.transpose(0, 2, 1).reshape(n_r * tr, out_rows)
    return out[:R, :k_s].reshape(N, C, k_s, k_s)


if __name__ == "__main__":
    key = jax.random.PRNGKey(0)

    # 1) Module's documented use: k_s=1 (global average pool), f32.
    N, C, H, W = 2, 4, 16, 16
    x = jax.random.normal(key, (N, C, H, W), dtype=jnp.float32)
    out = jax.block_until_ready(global_adaptive_avg_pool2d(x, k_s=1))
    ref = jnp.mean(x, axis=(2, 3), keepdims=True)
    assert out.shape == (N, C, 1, 1), out.shape
    assert jnp.allclose(out, ref, atol=1e-5, rtol=1e-5), "k_s=1 mismatch"

    # 2) Tiled reduction / gated tail-masking / multi-row-block path: tiny forced block
    #    budget on a shape whose L=192 is not a multiple of 128.
    x2 = jax.random.normal(jax.random.PRNGKey(0), (2, 12, 8, 24), dtype=jnp.float32)
    out2 = jax.block_until_ready(
        global_adaptive_avg_pool2d(x2, k_s=1, block_target_bytes=4096))
    ref2 = jnp.mean(x2, axis=(2, 3), keepdims=True)
    assert jnp.allclose(out2, ref2, atol=1e-5, rtol=1e-5), "tiled path mismatch"

    # 3) k_s > 1 path (window-selector kernel, no extra HBM copy), single L block.
    x3 = jax.random.normal(jax.random.PRNGKey(0), (2, 3, 16, 16), dtype=jnp.float32)
    out3 = jax.block_until_ready(global_adaptive_avg_pool2d(x3, k_s=2))
    ref3 = x3.reshape(2, 3, 2, 8, 2, 8).mean(axis=(3, 5))
    assert out3.shape == (2, 3, 2, 2), out3.shape
    assert jnp.allclose(out3, ref3, atol=1e-5, rtol=1e-5), "k_s=2 mismatch"

    # 4) k_s > 1 with a tiled/tail reduction axis and multiple row blocks.
    x5 = jax.random.normal(jax.random.PRNGKey(2), (2, 3, 12, 36), dtype=jnp.float32)
    out5 = jax.block_until_ready(
        global_adaptive_avg_pool2d(x5, k_s=3, block_target_bytes=4096))
    ref5 = x5.reshape(2, 3, 3, 4, 3, 12).mean(axis=(3, 5))
    assert jnp.allclose(out5, ref5, atol=1e-5, rtol=1e-5), "k_s=3 tiled mismatch"

    # 5) bf16 input (16-row sublane packing path).
    x4 = jax.random.normal(jax.random.PRNGKey(1), (2, 4, 16, 16), dtype=jnp.bfloat16)
    out4 = jax.block_until_ready(global_adaptive_avg_pool2d(x4, k_s=1))
    ref4 = jnp.mean(x4.astype(jnp.float32), axis=(2, 3), keepdims=True)
    assert jnp.allclose(out4.astype(jnp.float32), ref4, atol=2e-2, rtol=2e-2), "bf16 mismatch"

    print("KERNEL_OK")
</pallas_src>

<mosaic_0001>
module attributes {stable_mosaic.version = 11 : i64} {
  func.func @_pool_sum_kernel(%arg0: i32, %arg1: i32, %arg2: memref<8x256xf32, #tpu.memory_space<vmem>>, %arg3: memref<1x1x8xf32, #tpu.memory_space<vmem>>, %arg4: memref<8x8xf32, #tpu.memory_space<vmem>>) attributes {dimension_semantics = [#tpu.dimension_semantics<parallel>, #tpu.dimension_semantics<arbitrary>], iteration_bounds = array<i64: 1, 1>, scalar_prefetch = 0 : i64, scratch_operands = 1 : i64, tpu.core_type = #tpu.core_type<tc>, window_params = [{transform_indices = @transform_0, window_bounds = array<i64: 8, 256>}, {transform_indices = @transform_1, window_bounds = array<i64: 1, 1, 8>}]} {
    %c0_i32 = arith.constant 0 : i32
    %0 = arith.cmpi eq, %arg1, %c0_i32 : i32
    %1 = arith.extui %0 : i1 to i32
    %c0_i32_0 = arith.constant 0 : i32
    %2 = arith.cmpi ne, %1, %c0_i32_0 : i32
    scf.if %2 {
      %cst_9 = arith.constant 0.000000e+00 : f32
      %12 = vector.broadcast %cst_9 : f32 to vector<8x8xf32>
      %c0_10 = arith.constant 0 : index
      %c0_11 = arith.constant 0 : index
      %13 = vector.load %arg4[%c0_10, %c0_11] : memref<8x8xf32, #tpu.memory_space<vmem>>, vector<8x8xf32>
      tpu.vector_store %arg4[%c0_10, %c0_11], %12 {strides = array<i32>} : memref<8x8xf32, #tpu.memory_space<vmem>>, vector<8x8xf32>,
    } else {
    }
    %c0 = arith.constant 0 : index
    %c0_1 = arith.constant 0 : index
    %3 = vector.load %arg2[%c0, %c0_1] : memref<8x256xf32, #tpu.memory_space<vmem>>, vector<8x256xf32>
    %cst = arith.constant 1.000000e+00 : f32
    %4 = vector.broadcast %cst : f32 to vector<8x256xf32>
    %cst_2 = arith.constant dense<0.000000e+00> : vector<8x8xf32>
    %5 = tpu.matmul %4, %3, %cst_2 {dimension_numbers = #tpu.dot_dimension_numbers<[1], [1], [0], [0], [0, 0, 1, 0], [], []>, precision = #tpu.contract_precision<fp32>} : vector<8x256xf32>, vector<8x256xf32>, vector<8x8xf32> -> vector<8x8xf32>
    %c0_3 = arith.constant 0 : index
    %c0_4 = arith.constant 0 : index
    %6 = vector.load %arg4[%c0_3, %c0_4] : memref<8x8xf32, #tpu.memory_space<vmem>>, vector<8x8xf32>
    %7 = arith.addf %6, %5 : vector<8x8xf32>
    %c0_5 = arith.constant 0 : index
    %c0_6 = arith.constant 0 : index
    %8 = vector.load %arg4[%c0_5, %c0_6] : memref<8x8xf32, #tpu.memory_space<vmem>>, vector<8x8xf32>
    tpu.vector_store %arg4[%c0_5, %c0_6], %7 {strides = array<i32>} : memref<8x8xf32, #tpu.memory_space<vmem>>, vector<8x8xf32>,
    %c0_i32_7 = arith.constant 0 : i32
    %9 = arith.cmpi eq, %arg1, %c0_i32_7 : i32
    %10 = arith.extui %9 : i1 to i32
    %c0_i32_8 = arith.constant 0 : i32
    %11 = arith.cmpi ne, %10, %c0_i32_8 : i32
    scf.if %11 {
      %c0_9 = arith.constant 0 : index
      %c0_10 = arith.constant 0 : index
      %12 = vector.load %arg4[%c0_9, %c0_10] : memref<8x8xf32, #tpu.memory_space<vmem>>, vector<1x8xf32>
      %cst_11 = arith.constant 3.906250e-03 : f32
      %13 = vector.broadcast %cst_11 : f32 to vector<1x8xf32>
      %14 = arith.mulf %12, %13 : vector<1x8xf32>
      %15 = vector.shape_cast %14 : vector<1x8xf32> to vector<1x1x8xf32>
      %c0_12 = arith.constant 0 : index
      %c0_13 = arith.constant 0 : index
      %c0_14 = arith.constant 0 : index
      %16 = vector.load %arg3[%c0_12, %c0_13, %c0_14] : memref<1x1x8xf32, #tpu.memory_space<vmem>>, vector<1x1x8xf32>
      tpu.vector_store %arg3[%c0_12, %c0_13, %c0_14], %15 {strides = array<i32>} : memref<1x1x8xf32, #tpu.memory_space<vmem>>, vector<1x1x8xf32>,
    } else {
    }
    return
  }
  func.func @transform_0(%arg0: i32, %arg1: i32) -> (i32, i32) {
    %c0_i32 = arith.constant 0 : i32
    return %arg0, %arg1 : i32, i32
  }
  func.func @transform_1(%arg0: i32, %arg1: i32) -> (i32, i32, i32) {
    %c0_i32 = arith.constant 0 : i32
    %c0_i32_0 = arith.constant 0 : i32
    %c0_i32_1 = arith.constant 0 : i32
    return %arg0, %c0_i32, %c0_i32_0 : i32, i32, i32
  }
}

</mosaic_0001>

<llo_original>
// kernel: tpu_custom_call.1
$region0: #{tpu_custom_call.1}
  #allocation0 [shape = 'u32[]', space=smem, size = 0x4, offset = 0x4, fixed_abs, tag = 'smem constant byte address 0x4 - core index']
  #allocation1 [shape = 'u32[144,128]{1,0:T(1,128)}', space=vmem, size = 0x12000, scoped, tag = 'internal scratch']
  #allocation2 [shape = 'f32[8,8]{1,0:T(8,128)}', space=vmem, size = 0x1000, scoped, tag = 'scratch operand']
  %s0 = inlined_call_operand.hbm [shape: f32[8,256], index: 0, kind: input, shape index: {}]
  %s1 = inlined_call_operand.hbm [shape: f32[1,1,8], index: 1, kind: output, shape index: {}]
  %s2 = sld [smem:[#allocation0]]
  $region26: #{tpu_custom_call.1} parent=0
    _
  %s4 = ssub.s32 1, %s2
  %s5 = scalar_select 0, %s4, %s2
  $region1: #{tpu_custom_call.1} parent=0
    #allocation3 [shape = 'u8[8192]{0}', space=vmem, size = 0x2000, scoped, tag = 'input window, operand 0, single buffered']
    #allocation4 [shape = 's32[1]{0}', space=sflag, size = 0x4, scoped, tag = 'scoped memory for tpu_custom_call.1']
    #allocation5 [shape = 's32[1]{0}', space=sflag, size = 0x4, scoped, tag = 'scoped memory for tpu_custom_call.1']
    #allocation6 [shape = 'u8[512]{0}', space=vmem, size = 0x400, scoped, tag = 'output window, operand 0, single buffered']
    %6 = vsyncpa [#allocation4], 0
    %7 = vsyncpa [#allocation5], 0
    // Predicated region
    $region2: #{tpu_custom_call.1} parent=1 // pred_check
      _
    $region3: #{tpu_custom_call.1} parent=1 // pred_check_branch
      %9 = sbr.rel (0) target = $region5
    $region4: #{tpu_custom_call.1} parent=1 // pred_region
      %s11 = ssub.s32 256, 256
      %12 = vsyncadd [#allocation4], %s11
      %s14 = sshll.u32 [#allocation3], 4
      %s15 = int_to_ptr.vmem [resolvable:$true] %s14
      %17 = dma.hbm_to_vmem [thread:$0]  %s0, 256, %s15, [#allocation4]
    $region5: #{tpu_custom_call.1} parent=1 // pred_fallthru
      _
    // Predicated region
    $region6: #{tpu_custom_call.1} parent=1 // pred_check
      _
    $region7: #{tpu_custom_call.1} parent=1 // pred_check_branch
      %19 = sbr.rel (0) target = $region9
    $region8: #{tpu_custom_call.1} parent=1 // pred_region
      %20 = dma.done [#allocation4], 256
    $region9: #{tpu_custom_call.1} parent=1 // pred_fallthru
      _
    %p21 = scmp.eq.s32.totalorder 0, 0
    // Predicated region
    $region10: #{tpu_custom_call.1} parent=1 // pred_check
      %p22 = pneg %p21
    $region11: #{tpu_custom_call.1} parent=1 // pred_check_branch
      %24 = sbr.rel (%p22) target = $region13
    $region12: #{tpu_custom_call.1} parent=1 // pred_region
      %vm25 = vcmask 64512
      %26 = vst.msk [vmem:[#allocation2] sm:$0xff] %vm25, 0.0
    $region13: #{tpu_custom_call.1} parent=1 // pred_fallthru
      _
    %v27 = vld [vmem:[#allocation3] sm:$0xff]
    %v28 = vld [vmem:[#allocation3 + $0x8] sm:$0xff]
    %v29 = vand.u32 %v28, 4294901760
    %30 = vmatprep.subr.mxu0 %v29
    %v31 = vand.u32 %v27, 4294901760
    %32 = vmatpush1.xpose.msra.mxu0 %v31
    %33 = vmatprep.subr.mxu0 0.0
    %34 = vmatpush1.xpose.msra.mxu0 0.0
    %35 = vmatprep.subr.mxu0 0.0
    %36 = vmatpush1.xpose.msra.mxu0 0.0
    %37 = vmatprep.subr.mxu0 0.0
    %38 = vmatpush1.xpose.msra.mxu0 0.0
    %39 = vmatprep.subr.mxu0 0.0
    %40 = vmatpush1.xpose.msra.mxu0 0.0
    %41 = vmatprep.subr.mxu0 0.0
    %42 = vmatpush1.xpose.msra.mxu0 0.0
    %43 = vmatprep.subr.mxu0 0.0
    %44 = vmatpush1.xpose.msra.mxu0 0.0
    %45 = vmatprep.subr.mxu0 0.0
    %46 = vmatpush1.xpose.msra.mxu0 0.0
    %47 = vmatprep.subr.mxu0 0.0
    %48 = vmatpush1.xpose.msra.mxu0 0.0
    %49 = vmatprep.subr.mxu0 0.0
    %50 = vmatpush1.xpose.msra.mxu0 0.0
    %51 = vmatprep.subr.mxu0 0.0
    %52 = vmatpush1.xpose.msra.mxu0 0.0
    %53 = vmatprep.subr.mxu0 0.0
    %54 = vmatpush1.xpose.msra.mxu0 0.0
    %55 = vmatprep.subr.mxu0 0.0
    %56 = vmatpush1.xpose.msra.mxu0 0.0
    %57 = vmatprep.subr.mxu0 0.0
    %58 = vmatpush1.xpose.msra.mxu0 0.0
    %59 = vmatprep.subr.mxu0 0.0
    %60 = vmatpush1.xpose.msra.mxu0 0.0
    %61 = vmatprep.subr.mxu0 0.0
    %62 = vmatpush1.xpose.msra.mxu0 0.0
    %63 = vmatprep.subr.mxu0 0.0
    %64 = vmatpush1.xpose.msra.mxu0 0.0
    %65 = vmatprep.subr.mxu0 0.0
    %66 = vmatpush1.xpose.msra.mxu0 0.0
    %67 = vmatprep.subr.mxu0 0.0
    %68 = vmatpush1.xpose.msra.mxu0 0.0
    %69 = vmatprep.subr.mxu0 0.0
    %70 = vmatpush1.xpose.msra.mxu0 0.0
    %71 = vmatprep.subr.mxu0 0.0
    %72 = vmatpush1.xpose.msra.mxu0 0.0
    %73 = vmatprep.subr.mxu0 0.0
    %74 = vmatpush1.xpose.msra.mxu0 0.0
    %75 = vmatprep.subr.mxu0 0.0
    %76 = vmatpush1.xpose.msra.mxu0 0.0
    %77 = vmatprep.subr.mxu0 0.0
    %78 = vmatpush1.xpose.msra.mxu0 0.0
    %79 = vmatprep.subr.mxu0 0.0
    %80 = vmatpush1.xpose.msra.mxu0 0.0
    %81 = vmatprep.subr.mxu0 0.0
    %82 = vmatpush1.xpose.msra.mxu0 0.0
    %83 = vmatprep.subr.mxu0 0.0
    %84 = vmatpush1.xpose.msra.mxu0 0.0
    %85 = vmatprep.subr.mxu0 0.0
    %86 = vmatpush1.xpose.msra.mxu0 0.0
    %87 = vmatprep.subr.mxu0 0.0
    %88 = vmatpush1.xpose.msra.mxu0 0.0
    %89 = vmatprep.subr.mxu0 0.0
    %90 = vmatpush1.xpose.msra.mxu0 0.0
    %91 = vmatprep.subr.mxu0 0.0
    %92 = vmatpush1.xpose.msra.mxu0 0.0
    %93 = vmatprep.subr.mxu0 0.0
    %94 = vmatpush1.xpose.msra.mxu0 0.0
    %95 = vmatprep.mubr.f32.mxu0 0.0
    %96 = vmatmul.mubr.f32.gmra.mrb[0].mxu0 0.0
    %v97 = vpop.f32.mrb[0].mxu0
    %v98 = vadd.f32 0.0, %v97
    %v99 = vpop.f32.mrb[0].mxu0
    %100 = vdwg.mxu0
    %v101 = vand.u32 %v28, 4294901760
    %v102 = vsub.f32 %v28, %v101
    %v103 = vand.u32 %v102, 4294901760
    %v104 = vsub.f32 %v102, %v103
    %v105 = vand.u32 %v104, 4294901760
    %106 = vmatprep.subr.mxu0 %v105
    %v107 = vand.u32 %v27, 4294901760
    %v108 = vsub.f32 %v27, %v107
    %v109 = vand.u32 %v108, 4294901760
    %v110 = vsub.f32 %v108, %v109
    %v111 = vand.u32 %v110, 4294901760
    %112 = vmatpush1.xpose.msra.mxu0 %v111
    %113 = vmatprep.subr.mxu0 0.0
    %114 = vmatpush1.xpose.msra.mxu0 0.0
    %115 = vmatprep.subr.mxu0 0.0
    %116 = vmatpush1.xpose.msra.mxu0 0.0
    %117 = vmatprep.subr.mxu0 0.0
    %118 = vmatpush1.xpose.msra.mxu0 0.0
    %119 = vmatprep.subr.mxu0 0.0
    %120 = vmatpush1.xpose.msra.mxu0 0.0
    %121 = vmatprep.subr.mxu0 0.0
    %122 = vmatpush1.xpose.msra.mxu0 0.0
    %123 = vmatprep.subr.mxu0 0.0
    %124 = vmatpush1.xpose.msra.mxu0 0.0
    %125 = vmatprep.subr.mxu0 0.0
    %126 = vmatpush1.xpose.msra.mxu0 0.0
    %127 = vmatprep.subr.mxu0 0.0
    %128 = vmatpush1.xpose.msra.mxu0 0.0
    %129 = vmatprep.subr.mxu0 0.0
    %130 = vmatpush1.xpose.msra.mxu0 0.0
    %131 = vmatprep.subr.mxu0 0.0
    %132 = vmatpush1.xpose.msra.mxu0 0.0
    %133 = vmatprep.subr.mxu0 0.0
    %134 = vmatpush1.xpose.msra.mxu0 0.0
    %135 = vmatprep.subr.mxu0 0.0
    %136 = vmatpush1.xpose.msra.mxu0 0.0
    %137 = vmatprep.subr.mxu0 0.0
    %138 = vmatpush1.xpose.msra.mxu0 0.0
    %139 = vmatprep.subr.mxu0 0.0
    %140 = vmatpush1.xpose.msra.mxu0 0.0
    %141 = vmatprep.subr.mxu0 0.0
    %142 = vmatpush1.xpose.msra.mxu0 0.0
    %143 = vmatprep.subr.mxu0 0.0
    %144 = vmatpush1.xpose.msra.mxu0 0.0
    %145 = vmatprep.subr.mxu0 0.0
    %146 = vmatpush1.xpose.msra.mxu0 0.0
    %147 = vmatprep.subr.mxu0 0.0
    %148 = vmatpush1.xpose.msra.mxu0 0.0
    %149 = vmatprep.subr.mxu0 0.0
    %150 = vmatpush1.xpose.msra.mxu0 0.0
    %151 = vmatprep.subr.mxu0 0.0
    %152 = vmatpush1.xpose.msra.mxu0 0.0
    %153 = vmatprep.subr.mxu0 0.0
    %154 = vmatpush1.xpose.msra.mxu0 0.0
    %155 = vmatprep.subr.mxu0 0.0
    %156 = vmatpush1.xpose.msra.mxu0 0.0
    %157 = vmatprep.subr.mxu0 0.0
    %158 = vmatpush1.xpose.msra.mxu0 0.0
    %159 = vmatprep.subr.mxu0 0.0
    %160 = vmatpush1.xpose.msra.mxu0 0.0
    %161 = vmatprep.subr.mxu0 0.0
    %162 = vmatpush1.xpose.msra.mxu0 0.0
    %163 = vmatprep.subr.mxu0 0.0
    %164 = vmatpush1.xpose.msra.mxu0 0.0
    %165 = vmatprep.subr.mxu0 0.0
    %166 = vmatpush1.xpose.msra.mxu0 0.0
    %167 = vmatprep.subr.mxu0 0.0
    %168 = vmatpush1.xpose.msra.mxu0 0.0
    %169 = vmatprep.subr.mxu0 0.0
    %170 = vmatpush1.xpose.msra.mxu0 0.0
    %171 = vmatprep.subr.mxu0 0.0
    %172 = vmatpush1.xpose.msra.mxu0 0.0
    %173 = vmatprep.subr.mxu0 0.0
    %174 = vmatpush1.xpose.msra.mxu0 0.0
    %175 = vmatprep.mubr.f32.mxu0 1.0
    %176 = vmatmul.mubr.f32.gmra.mrb[0].mxu0 1.0
    %v177 = vpop.f32.mrb[0].mxu0
    %v178 = vadd.f32 %v98, %v177
    %v179 = vpop.f32.mrb[0].mxu0
    %180 = vdwg.mxu0
    %v181 = vand.u32 %v28, 4294901760
    %v182 = vsub.f32 %v28, %v181
    %183 = vmatprep.subr.mxu0 %v182
    %v184 = vand.u32 %v27, 4294901760
    %v185 = vsub.f32 %v27, %v184
    %186 = vmatpush1.xpose.msra.mxu0 %v185
    %187 = vmatprep.subr.mxu0 0.0
    %188 = vmatpush1.xpose.msra.mxu0 0.0
    %189 = vmatprep.subr.mxu0 0.0
    %190 = vmatpush1.xpose.msra.mxu0 0.0
    %191 = vmatprep.subr.mxu0 0.0
    %192 = vmatpush1.xpose.msra.mxu0 0.0
    %193 = vmatprep.subr.mxu0 0.0
    %194 = vmatpush1.xpose.msra.mxu0 0.0
    %195 = vmatprep.subr.mxu0 0.0
    %196 = vmatpush1.xpose.msra.mxu0 0.0
    %197 = vmatprep.subr.mxu0 0.0
    %198 = vmatpush1.xpose.msra.mxu0 0.0
    %199 = vmatprep.subr.mxu0 0.0
    %200 = vmatpush1.xpose.msra.mxu0 0.0
    %201 = vmatprep.subr.mxu0 0.0
    %202 = vmatpush1.xpose.msra.mxu0 0.0
    %203 = vmatprep.subr.mxu0 0.0
    %204 = vmatpush1.xpose.msra.mxu0 0.0
    %205 = vmatprep.subr.mxu0 0.0
    %206 = vmatpush1.xpose.msra.mxu0 0.0
    %207 = vmatprep.subr.mxu0 0.0
    %208 = vmatpush1.xpose.msra.mxu0 0.0
    %209 = vmatprep.subr.mxu0 0.0
    %210 = vmatpush1.xpose.msra.mxu0 0.0
    %211 = vmatprep.subr.mxu0 0.0
    %212 = vmatpush1.xpose.msra.mxu0 0.0
    %213 = vmatprep.subr.mxu0 0.0
    %214 = vmatpush1.xpose.msra.mxu0 0.0
    %215 = vmatprep.subr.mxu0 0.0
    %216 = vmatpush1.xpose.msra.mxu0 0.0
    %217 = vmatprep.subr.mxu0 0.0
    %218 = vmatpush1.xpose.msra.mxu0 0.0
    %219 = vmatprep.subr.mxu0 0.0
    %220 = vmatpush1.xpose.msra.mxu0 0.0
    %221 = vmatprep.subr.mxu0 0.0
    %222 = vmatpush1.xpose.msra.mxu0 0.0
    %223 = vmatprep.subr.mxu0 0.0
    %224 = vmatpush1.xpose.msra.mxu0 0.0
    %225 = vmatprep.subr.mxu0 0.0
    %226 = vmatpush1.xpose.msra.mxu0 0.0
    %227 = vmatprep.subr.mxu0 0.0
    %228 = vmatpush1.xpose.msra.mxu0 0.0
    %229 = vmatprep.subr.mxu0 0.0
    %230 = vmatpush1.xpose.msra.mxu0 0.0
    %231 = vmatprep.subr.mxu0 0.0
    %232 = vmatpush1.xpose.msra.mxu0 0.0
    %233 = vmatprep.subr.mxu0 0.0
    %234 = vmatpush1.xpose.msra.mxu0 0.0
    %235 = vmatprep.subr.mxu0 0.0
    %236 = vmatpush1.xpose.msra.mxu0 0.0
    %237 = vmatprep.subr.mxu0 0.0
    %238 = vmatpush1.xpose.msra.mxu0 0.0
    %239 = vmatprep.subr.mxu0 0.0
    %240 = vmatpush1.xpose.msra.mxu0 0.0
    %241 = vmatprep.subr.mxu0 0.0
    %242 = vmatpush1.xpose.msra.mxu0 0.0
    %243 = vmatprep.subr.mxu0 0.0
    %244 = vmatpush1.xpose.msra.mxu0 0.0
    %245 = vmatprep.subr.mxu0 0.0
    %246 = vmatpush1.xpose.msra.mxu0 0.0
    %247 = vmatprep.subr.mxu0 0.0
    %248 = vmatpush1.xpose.msra.mxu0 0.0
    %249 = vmatprep.mubr.f32.mxu0 0.0
    %250 = vmatmul.mubr.f32.gmra.mrb[0].mxu0 0.0
    %v251 = vpop.f32.mrb[0].mxu0
    %v252 = vadd.f32 %v178, %v251
    %v253 = vpop.f32.mrb[0].mxu0
    %254 = vdwg.mxu0
    %v255 = vand.u32 %v28, 4294901760
    %256 = vmatprep.subr.mxu0 %v255
    %v257 = vand.u32 %v27, 4294901760
    %258 = vmatpush1.xpose.msra.mxu0 %v257
    %259 = vmatprep.subr.mxu0 0.0
    %260 = vmatpush1.xpose.msra.mxu0 0.0
    %261 = vmatprep.subr.mxu0 0.0
    %262 = vmatpush1.xpose.msra.mxu0 0.0
    %263 = vmatprep.subr.mxu0 0.0
    %264 = vmatpush1.xpose.msra.mxu0 0.0
    %265 = vmatprep.subr.mxu0 0.0
    %266 = vmatpush1.xpose.msra.mxu0 0.0
    %267 = vmatprep.subr.mxu0 0.0
    %268 = vmatpush1.xpose.msra.mxu0 0.0
    %269 = vmatprep.subr.mxu0 0.0
    %270 = vmatpush1.xpose.msra.mxu0 0.0
    %271 = vmatprep.subr.mxu0 0.0
    %272 = vmatpush1.xpose.msra.mxu0 0.0
    %273 = vmatprep.subr.mxu0 0.0
    %274 = vmatpush1.xpose.msra.mxu0 0.0
    %275 = vmatprep.subr.mxu0 0.0
    %276 = vmatpush1.xpose.msra.mxu0 0.0
    %277 = vmatprep.subr.mxu0 0.0
    %278 = vmatpush1.xpose.msra.mxu0 0.0
    %279 = vmatprep.subr.mxu0 0.0
    %280 = vmatpush1.xpose.msra.mxu0 0.0
    %281 = vmatprep.subr.mxu0 0.0
    %282 = vmatpush1.xpose.msra.mxu0 0.0
    %283 = vmatprep.subr.mxu0 0.0
    %284 = vmatpush1.xpose.msra.mxu0 0.0
    %285 = vmatprep.subr.mxu0 0.0
    %286 = vmatpush1.xpose.msra.mxu0 0.0
    %287 = vmatprep.subr.mxu0 0.0
    %288 = vmatpush1.xpose.msra.mxu0 0.0
    %289 = vmatprep.subr.mxu0 0.0
    %290 = vmatpush1.xpose.msra.mxu0 0.0
    %291 = vmatprep.subr.mxu0 0.0
    %292 = vmatpush1.xpose.msra.mxu0 0.0
    %293 = vmatprep.subr.mxu0 0.0
    %294 = vmatpush1.xpose.msra.mxu0 0.0
    %295 = vmatprep.subr.mxu0 0.0
    %296 = vmatpush1.xpose.msra.mxu0 0.0
    %297 = vmatprep.subr.mxu0 0.0
    %298 = vmatpush1.xpose.msra.mxu0 0.0
    %299 = vmatprep.subr.mxu0 0.0
    %300 = vmatpush1.xpose.msra.mxu0 0.0
    %301 = vmatprep.subr.mxu0 0.0
    %302 = vmatpush1.xpose.msra.mxu0 0.0
    %303 = vmatprep.subr.mxu0 0.0
    %304 = vmatpush1.xpose.msra.mxu0 0.0
    %305 = vmatprep.subr.mxu0 0.0
    %306 = vmatpush1.xpose.msra.mxu0 0.0
    %307 = vmatprep.subr.mxu0 0.0
    %308 = vmatpush1.xpose.msra.mxu0 0.0
    %309 = vmatprep.subr.mxu0 0.0
    %310 = vmatpush1.xpose.msra.mxu0 0.0
    %311 = vmatprep.subr.mxu0 0.0
    %312 = vmatpush1.xpose.msra.mxu0 0.0
    %313 = vmatprep.subr.mxu0 0.0
    %314 = vmatpush1.xpose.msra.mxu0 0.0
    %315 = vmatprep.subr.mxu0 0.0
    %316 = vmatpush1.xpose.msra.mxu0 0.0
    %317 = vmatprep.subr.mxu0 0.0
    %318 = vmatpush1.xpose.msra.mxu0 0.0
    %319 = vmatprep.subr.mxu0 0.0
    %320 = vmatpush1.xpose.msra.mxu0 0.0
    %321 = vmatprep.mubr.f32.mxu0 0.0
    %322 = vmatmul.mubr.f32.gmra.mrb[0].mxu0 0.0
    %v323 = vpop.f32.mrb[0].mxu0
    %v324 = vadd.f32 %v252, %v323
    %v325 = vpop.f32.mrb[0].mxu0
    %326 = vdwg.mxu0
    %v327 = vand.u32 %v28, 4294901760
    %v328 = vsub.f32 %v28, %v327
    %v329 = vand.u32 %v328, 4294901760
    %330 = vmatprep.subr.mxu0 %v329
    %v331 = vand.u32 %v27, 4294901760
    %v332 = vsub.f32 %v27, %v331
    %v333 = vand.u32 %v332, 4294901760
    %334 = vmatpush1.xpose.msra.mxu0 %v333
    %335 = vmatprep.subr.mxu0 0.0
    %336 = vmatpush1.xpose.msra.mxu0 0.0
    %337 = vmatprep.subr.mxu0 0.0
    %338 = vmatpush1.xpose.msra.mxu0 0.0
    %339 = vmatprep.subr.mxu0 0.0
    %340 = vmatpush1.xpose.msra.mxu0 0.0
    %341 = vmatprep.subr.mxu0 0.0
    %342 = vmatpush1.xpose.msra.mxu0 0.0
    %343 = vmatprep.subr.mxu0 0.0
    %344 = vmatpush1.xpose.msra.mxu0 0.0
    %345 = vmatprep.subr.mxu0 0.0
    %346 = vmatpush1.xpose.msra.mxu0 0.0
    %347 = vmatprep.subr.mxu0 0.0
    %348 = vmatpush1.xpose.msra.mxu0 0.0
    %349 = vmatprep.subr.mxu0 0.0
    %350 = vmatpush1.xpose.msra.mxu0 0.0
    %351 = vmatprep.subr.mxu0 0.0
    %352 = vmatpush1.xpose.msra.mxu0 0.0
    %353 = vmatprep.subr.mxu0 0.0
    %354 = vmatpush1.xpose.msra.mxu0 0.0
    %355 = vmatprep.subr.mxu0 0.0
    %356 = vmatpush1.xpose.msra.mxu0 0.0
    %357 = vmatprep.subr.mxu0 0.0
    %358 = vmatpush1.xpose.msra.mxu0 0.0
    %359 = vmatprep.subr.mxu0 0.0
    %360 = vmatpush1.xpose.msra.mxu0 0.0
    %361 = vmatprep.subr.mxu0 0.0
    %362 = vmatpush1.xpose.msra.mxu0 0.0
    %363 = vmatprep.subr.mxu0 0.0
    %364 = vmatpush1.xpose.msra.mxu0 0.0
    %365 = vmatprep.subr.mxu0 0.0
    %366 = vmatpush1.xpose.msra.mxu0 0.0
    %367 = vmatprep.subr.mxu0 0.0
    %368 = vmatpush1.xpose.msra.mxu0 0.0
    %369 = vmatprep.subr.mxu0 0.0
    %370 = vmatpush1.xpose.msra.mxu0 0.0
    %371 = vmatprep.subr.mxu0 0.0
    %372 = vmatpush1.xpose.msra.mxu0 0.0
    %373 = vmatprep.subr.mxu0 0.0
    %374 = vmatpush1.xpose.msra.mxu0 0.0
    %375 = vmatprep.subr.mxu0 0.0
    %376 = vmatpush1.xpose.msra.mxu0 0.0
    %377 = vmatprep.subr.mxu0 0.0
    %378 = vmatpush1.xpose.msra.mxu0 0.0
    %379 = vmatprep.subr.mxu0 0.0
    %380 = vmatpush1.xpose.msra.mxu0 0.0
    %381 = vmatprep.subr.mxu0 0.0
    %382 = vmatpush1.xpose.msra.mxu0 0.0
    %383 = vmatprep.subr.mxu0 0.0
    %384 = vmatpush1.xpose.msra.mxu0 0.0
    %385 = vmatprep.subr.mxu0 0.0
    %386 = vmatpush1.xpose.msra.mxu0 0.0
    %387 = vmatprep.subr.mxu0 0.0
    %388 = vmatpush1.xpose.msra.mxu0 0.0
    %389 = vmatprep.subr.mxu0 0.0
    %390 = vmatpush1.xpose.msra.mxu0 0.0
    %391 = vmatprep.subr.mxu0 0.0
    %392 = vmatpush1.xpose.msra.mxu0 0.0
    %393 = vmatprep.subr.mxu0 0.0
    %394 = vmatpush1.xpose.msra.mxu0 0.0
    %395 = vmatprep.subr.mxu0 0.0
    %396 = vmatpush1.xpose.msra.mxu0 0.0
    %397 = vmatprep.mubr.f32.mxu0 1.0
    %398 = vmatmul.mubr.f32.gmra.mrb[0].mxu0 1.0
    %v399 = vpop.f32.mrb[0].mxu0
    %v400 = vadd.f32 %v324, %v399
    %v401 = vpop.f32.mrb[0].mxu0
    %402 = vdwg.mxu0
    %v403 = vand.u32 %v28, 4294901760
    %404 = vmatprep.subr.mxu0 %v403
    %v405 = vand.u32 %v27, 4294901760
    %406 = vmatpush1.xpose.msra.mxu0 %v405
    %407 = vmatprep.subr.mxu0 0.0
    %408 = vmatpush1.xpose.msra.mxu0 0.0
    %409 = vmatprep.subr.mxu0 0.0
    %410 = vmatpush1.xpose.msra.mxu0 0.0
    %411 = vmatprep.subr.mxu0 0.0
    %412 = vmatpush1.xpose.msra.mxu0 0.0
    %413 = vmatprep.subr.mxu0 0.0
    %414 = vmatpush1.xpose.msra.mxu0 0.0
    %415 = vmatprep.subr.mxu0 0.0
    %416 = vmatpush1.xpose.msra.mxu0 0.0
    %417 = vmatprep.subr.mxu0 0.0
    %418 = vmatpush1.xpose.msra.mxu0 0.0
    %419 = vmatprep.subr.mxu0 0.0
    %420 = vmatpush1.xpose.msra.mxu0 0.0
    %421 = vmatprep.subr.mxu0 0.0
    %422 = vmatpush1.xpose.msra.mxu0 0.0
    %423 = vmatprep.subr.mxu0 0.0
    %424 = vmatpush1.xpose.msra.mxu0 0.0
    %425 = vmatprep.subr.mxu0 0.0
    %426 = vmatpush1.xpose.msra.mxu0 0.0
    %427 = vmatprep.subr.mxu0 0.0
    %428 = vmatpush1.xpose.msra.mxu0 0.0
    %429 = vmatprep.subr.mxu0 0.0
    %430 = vmatpush1.xpose.msra.mxu0 0.0
    %431 = vmatprep.subr.mxu0 0.0
    %432 = vmatpush1.xpose.msra.mxu0 0.0
    %433 = vmatprep.subr.mxu0 0.0
    %434 = vmatpush1.xpose.msra.mxu0 0.0
    %435 = vmatprep.subr.mxu0 0.0
    %436 = vmatpush1.xpose.msra.mxu0 0.0
    %437 = vmatprep.subr.mxu0 0.0
    %438 = vmatpush1.xpose.msra.mxu0 0.0
    %439 = vmatprep.subr.mxu0 0.0
    %440 = vmatpush1.xpose.msra.mxu0 0.0
    %441 = vmatprep.subr.mxu0 0.0
    %442 = vmatpush1.xpose.msra.mxu0 0.0
    %443 = vmatprep.subr.mxu0 0.0
    %444 = vmatpush1.xpose.msra.mxu0 0.0
    %445 = vmatprep.subr.mxu0 0.0
    %446 = vmatpush1.xpose.msra.mxu0 0.0
    %447 = vmatprep.subr.mxu0 0.0
    %448 = vmatpush1.xpose.msra.mxu0 0.0
    %449 = vmatprep.subr.mxu0 0.0
    %450 = vmatpush1.xpose.msra.mxu0 0.0
    %451 = vmatprep.subr.mxu0 0.0
    %452 = vmatpush1.xpose.msra.mxu0 0.0
    %453 = vmatprep.subr.mxu0 0.0
    %454 = vmatpush1.xpose.msra.mxu0 0.0
    %455 = vmatprep.subr.mxu0 0.0
    %456 = vmatpush1.xpose.msra.mxu0 0.0
    %457 = vmatprep.subr.mxu0 0.0
    %458 = vmatpush1.xpose.msra.mxu0 0.0
    %459 = vmatprep.subr.mxu0 0.0
    %460 = vmatpush1.xpose.msra.mxu0 0.0
    %461 = vmatprep.subr.mxu0 0.0
    %462 = vmatpush1.xpose.msra.mxu0 0.0
    %463 = vmatprep.subr.mxu0 0.0
    %464 = vmatpush1.xpose.msra.mxu0 0.0
    %465 = vmatprep.subr.mxu0 0.0
    %466 = vmatpush1.xpose.msra.mxu0 0.0
    %467 = vmatprep.subr.mxu0 0.0
    %468 = vmatpush1.xpose.msra.mxu0 0.0
    %469 = vmatprep.mubr.f32.mxu0 1.0
    %470 = vmatmul.mubr.f32.gmra.mrb[0].mxu0 1.0
    %v471 = vpop.f32.mrb[0].mxu0
    %v472 = vadd.f32 %v400, %v471
    %v473 = vpop.f32.mrb[0].mxu0
    %474 = vdwg.mxu0
    %v475 = vld [vmem:[#allocation2] sm:$0xff]
    %v476 = vadd.f32 %v475, %v472
    %vm477 = vcmask 64512
    %478 = vst.msk [vmem:[#allocation2] sm:$0xff] %vm477, %v476
    // Predicated region
    $region14: #{tpu_custom_call.1} parent=1 // pred_check
      %p479 = pneg %p21
    $region15: #{tpu_custom_call.1} parent=1 // pred_check_branch
      %481 = sbr.rel (%p479) target = $region17
    $region16: #{tpu_custom_call.1} parent=1 // pred_region
      %v482 = vld [vmem:[#allocation2] sm:$0x1]
      %v483 = vmul.f32 %v482, 0.00390625
      %vm484 = vcmask 57344
      %485 = vst.msk [vmem:[#allocation6] sm:$0x1] %vm484, %v483
    $region17: #{tpu_custom_call.1} parent=1 // pred_fallthru
      _
    // Predicated region
    $region18: #{tpu_custom_call.1} parent=1 // pred_check
      _
    $region19: #{tpu_custom_call.1} parent=1 // pred_check_branch
      %487 = sbr.rel (0) target = $region21
    $region20: #{tpu_custom_call.1} parent=1 // pred_region
      %s489 = ssub.s32 16, 16
      %490 = vsyncadd [#allocation5], %s489
      %s492 = sshll.u32 [#allocation6], 4
      %s493 = int_to_ptr.vmem [resolvable:$true] %s492
      %495 = dma.vmem_to_hbm [thread:$0]  %s493, 16, %s1, [#allocation5]
    $region21: #{tpu_custom_call.1} parent=1 // pred_fallthru
      _
    // Predicated region
    $region22: #{tpu_custom_call.1} parent=1 // pred_check
      _
    $region23: #{tpu_custom_call.1} parent=1 // pred_check_branch
      %497 = sbr.rel (0) target = $region25
    $region24: #{tpu_custom_call.1} parent=1 // pred_region
      %498 = dma.done [#allocation5], 16
    $region25: #{tpu_custom_call.1} parent=1 // pred_fallthru
      _
    %499 = vsyncpa [#allocation4], 1
    %500 = vsyncpa [#allocation5], 1

</llo_original>
